<compile_context>
chip_gen: v7x
topology: tpu7x:2x2x1
jax: 0.10.0
libtpu: 0.0.40
codegen_flags: <defaults>
</compile_context>

<pallas_src>
import functools

import jax
import jax.numpy as jnp
from jax.experimental import pallas as pl
from jax.experimental.pallas import tpu as pltpu

input_size = 10
hidden_size = 10
output_size = 10

_SUBLANE = 8


def _round_up(n: int, m: int) -> int:
    return (n + m - 1) // m * m


def simple_fc_kernel(x_ref, w1_ref, b1_ref, w2_ref, b2_ref, o_ref):
    # One batch tile per grid step; weights/biases are resident every step.
    x = x_ref[...]                                            # (tb, in_f)
    h = jnp.dot(x, w1_ref[...], preferred_element_type=jnp.float32)
    h = h + b1_ref[...]                                       # (1, hid) broadcast
    h = jnp.maximum(h, 0.0)                                   # ReLU, f32 epilogue
    y = jnp.dot(h.astype(w2_ref.dtype), w2_ref[...],
                preferred_element_type=jnp.float32)
    y = y + b2_ref[...]                                       # (1, out_f) broadcast
    o_ref[...] = y.astype(o_ref.dtype)


@functools.partial(jax.jit, static_argnames=("tile_b", "use_pallas"))
def simple_fc(x, w1, b1, w2, b2, *, tile_b: int = 512, use_pallas: bool = True):
    batch, in_f = x.shape
    hid = w1.shape[1]
    out_f = w2.shape[1]

    # Accept PyTorch-style 1-D biases; no-op for (1, n) biases.
    b1 = b1.reshape(1, hid)
    b2 = b2.reshape(1, out_f)

    # Optional short-circuit for truly tiny problems where launch overhead
    # dominates (kept off by default so the Pallas path is exercised).
    if not use_pallas:
        return jnp.maximum(x @ w1 + b1, 0.0) @ w2 + b2

    # --- batch tiling: sublane-align only; features stay at true width -----
    batch_p = _round_up(batch, _SUBLANE)
    tb = min(tile_b, batch_p)
    if batch_p >= 2 * _SUBLANE:
        # Keep >= 2 grid steps so the "parallel" batch axis shards across both
        # TensorCores on v7x (harmless ~0.35 us extra step on v5e/v6e).
        tb = min(tb, _round_up(pl.cdiv(batch_p, 2), _SUBLANE))
    tb = _round_up(tb, _SUBLANE)
    grid = (pl.cdiv(batch_p, tb),)

    if batch_p != batch:
        x = jnp.pad(x, ((0, batch_p - batch), (0, 0)))

    def _nbytes(a):
        return a.size * jnp.dtype(a.dtype).itemsize

    cost = pl.CostEstimate(
        flops=2 * batch_p * in_f * hid + 2 * batch_p * hid * out_f,
        transcendentals=0,
        bytes_accessed=(_nbytes(x) + _nbytes(w1) + _nbytes(b1)
                        + _nbytes(w2) + _nbytes(b2)
                        + batch_p * out_f * jnp.dtype(x.dtype).itemsize),
    )

    grid_spec = pltpu.PrefetchScalarGridSpec(
        num_scalar_prefetch=0,
        grid=grid,
        in_specs=[
            pl.BlockSpec((tb, in_f), lambda i: (i, 0)),     # x: batch-tiled, true width
            pl.BlockSpec((in_f, hid), lambda i: (0, 0)),    # W1: resident (full array)
            pl.BlockSpec((1, hid), lambda i: (0, 0)),       # b1: resident
            pl.BlockSpec((hid, out_f), lambda i: (0, 0)),   # W2: resident
            pl.BlockSpec((1, out_f), lambda i: (0, 0)),     # b2: resident
        ],
        out_specs=pl.BlockSpec((tb, out_f), lambda i: (i, 0)),  # true output width
    )

    out = pl.pallas_call(
        simple_fc_kernel,
        out_shape=jax.ShapeDtypeStruct((batch_p, out_f), x.dtype),
        grid_spec=grid_spec,
        compiler_params=pltpu.CompilerParams(
            dimension_semantics=("parallel",),   # shards batch over v7x's 2 TCs
        ),
        cost_estimate=cost,
    )(x, w1, b1, w2, b2)

    # Only the batch padding (if any) is sliced away; no feature-dim slice.
    return out[:batch] if batch_p != batch else out


def init_params(key, in_f, hid, out_f, dtype=jnp.float32):
    # Deterministic synthetic init (roughly Kaiming-uniform like nn.Linear).
    k1, k2, k3, k4 = jax.random.split(key, 4)
    lim1 = 1.0 / jnp.sqrt(in_f)
    lim2 = 1.0 / jnp.sqrt(hid)
    w1 = jax.random.uniform(k1, (in_f, hid), dtype, -lim1, lim1)
    b1 = jax.random.uniform(k2, (1, hid), dtype, -lim1, lim1)
    w2 = jax.random.uniform(k3, (hid, out_f), dtype, -lim2, lim2)
    b2 = jax.random.uniform(k4, (1, out_f), dtype, -lim2, lim2)
    return w1, b1, w2, b2


if __name__ == "__main__":
    key = jax.random.PRNGKey(0)
    kx, kx2, kp = jax.random.split(key, 3)

    w1, b1, w2, b2 = init_params(kp, input_size, hidden_size, output_size)

    def ref_fn(x):
        return jnp.maximum(x @ w1 + b1, 0.0) @ w2 + b2

    # Small, PyTorch-demo-sized batch (single grid step).
    x_small = jax.random.normal(kx, (8, input_size), jnp.float32)
    out_small = simple_fc(x_small, w1, b1, w2, b2)
    jax.block_until_ready(out_small)
    assert out_small.shape == (8, output_size)
    assert jnp.allclose(out_small, ref_fn(x_small), atol=1e-5, rtol=1e-5)

    # Larger batch exercising the batch grid (2 tiles x 128 rows).
    x_big = jax.random.normal(kx2, (256, input_size), jnp.float32)
    out_big = simple_fc(x_big, w1, b1, w2, b2, tile_b=128)
    jax.block_until_ready(out_big)
    assert out_big.shape == (256, output_size)
    assert jnp.allclose(out_big, ref_fn(x_big), atol=1e-5, rtol=1e-5)

    print("KERNEL_OK")
</pallas_src>

<mosaic_0001>
module attributes {stable_mosaic.version = 11 : i64} {
  func.func @simple_fc_kernel(%arg0: i32, %arg1: memref<8x10xf32, #tpu.memory_space<vmem>>, %arg2: memref<10x10xf32, #tpu.memory_space<vmem>>, %arg3: memref<1x10xf32, #tpu.memory_space<vmem>>, %arg4: memref<10x10xf32, #tpu.memory_space<vmem>>, %arg5: memref<1x10xf32, #tpu.memory_space<vmem>>, %arg6: memref<8x10xf32, #tpu.memory_space<vmem>>) attributes {dimension_semantics = [#tpu.dimension_semantics<parallel>], iteration_bounds = array<i64: 1>, scalar_prefetch = 0 : i64, scratch_operands = 0 : i64, tpu.core_type = #tpu.core_type<tc>, window_params = [{transform_indices = @transform_0, window_bounds = array<i64: 8, 10>}, {pipeline_mode = #tpu.pipeline_mode<synchronous>, transform_indices = @transform_1, window_bounds = array<i64: 10, 10>}, {pipeline_mode = #tpu.pipeline_mode<synchronous>, transform_indices = @transform_2, window_bounds = array<i64: 1, 10>}, {pipeline_mode = #tpu.pipeline_mode<synchronous>, transform_indices = @transform_3, window_bounds = array<i64: 10, 10>}, {pipeline_mode = #tpu.pipeline_mode<synchronous>, transform_indices = @transform_4, window_bounds = array<i64: 1, 10>}, {transform_indices = @transform_5, window_bounds = array<i64: 8, 10>}]} {
    %c0 = arith.constant 0 : index
    %c0_0 = arith.constant 0 : index
    %0 = vector.load %arg1[%c0, %c0_0] : memref<8x10xf32, #tpu.memory_space<vmem>>, vector<8x10xf32>
    %c0_1 = arith.constant 0 : index
    %c0_2 = arith.constant 0 : index
    %1 = vector.load %arg2[%c0_1, %c0_2] : memref<10x10xf32, #tpu.memory_space<vmem>>, vector<10x10xf32>
    %cst = arith.constant dense<0.000000e+00> : vector<8x10xf32>
    %2 = tpu.matmul %0, %1, %cst {dimension_numbers = #tpu.dot_dimension_numbers<[1], [0], [0], [1], [0, 0, 1, 1], [], []>} : vector<8x10xf32>, vector<10x10xf32>, vector<8x10xf32> -> vector<8x10xf32>
    %c0_3 = arith.constant 0 : index
    %c0_4 = arith.constant 0 : index
    %3 = vector.load %arg3[%c0_3, %c0_4] : memref<1x10xf32, #tpu.memory_space<vmem>>, vector<1x10xf32>
    %4 = vector.broadcast %3 : vector<1x10xf32> to vector<8x10xf32>
    %5 = arith.addf %2, %4 : vector<8x10xf32>
    %cst_5 = arith.constant 0.000000e+00 : f32
    %6 = vector.broadcast %cst_5 : f32 to vector<8x10xf32>
    %7 = arith.maximumf %5, %6 : vector<8x10xf32>
    %c0_6 = arith.constant 0 : index
    %c0_7 = arith.constant 0 : index
    %8 = vector.load %arg4[%c0_6, %c0_7] : memref<10x10xf32, #tpu.memory_space<vmem>>, vector<10x10xf32>
    %cst_8 = arith.constant dense<0.000000e+00> : vector<8x10xf32>
    %9 = tpu.matmul %7, %8, %cst_8 {dimension_numbers = #tpu.dot_dimension_numbers<[1], [0], [0], [1], [0, 0, 1, 1], [], []>} : vector<8x10xf32>, vector<10x10xf32>, vector<8x10xf32> -> vector<8x10xf32>
    %c0_9 = arith.constant 0 : index
    %c0_10 = arith.constant 0 : index
    %10 = vector.load %arg5[%c0_9, %c0_10] : memref<1x10xf32, #tpu.memory_space<vmem>>, vector<1x10xf32>
    %11 = vector.broadcast %10 : vector<1x10xf32> to vector<8x10xf32>
    %12 = arith.addf %9, %11 : vector<8x10xf32>
    %c0_11 = arith.constant 0 : index
    %c0_12 = arith.constant 0 : index
    %13 = vector.load %arg6[%c0_11, %c0_12] : memref<8x10xf32, #tpu.memory_space<vmem>>, vector<8x10xf32>
    tpu.vector_store %arg6[%c0_11, %c0_12], %12 {strides = array<i32>} : memref<8x10xf32, #tpu.memory_space<vmem>>, vector<8x10xf32>,
    return
  }
  func.func @transform_0(%arg0: i32) -> (i32, i32) {
    %c0_i32 = arith.constant 0 : i32
    %c0_i32_0 = arith.constant 0 : i32
    return %arg0, %c0_i32 : i32, i32
  }
  func.func @transform_1(%arg0: i32) -> (i32, i32) {
    %c0_i32 = arith.constant 0 : i32
    %c0_i32_0 = arith.constant 0 : i32
    %c0_i32_1 = arith.constant 0 : i32
    return %c0_i32, %c0_i32_0 : i32, i32
  }
  func.func @transform_2(%arg0: i32) -> (i32, i32) {
    %c0_i32 = arith.constant 0 : i32
    %c0_i32_0 = arith.constant 0 : i32
    %c0_i32_1 = arith.constant 0 : i32
    return %c0_i32, %c0_i32_0 : i32, i32
  }
  func.func @transform_3(%arg0: i32) -> (i32, i32) {
    %c0_i32 = arith.constant 0 : i32
    %c0_i32_0 = arith.constant 0 : i32
    %c0_i32_1 = arith.constant 0 : i32
    return %c0_i32, %c0_i32_0 : i32, i32
  }
  func.func @transform_4(%arg0: i32) -> (i32, i32) {
    %c0_i32 = arith.constant 0 : i32
    %c0_i32_0 = arith.constant 0 : i32
    %c0_i32_1 = arith.constant 0 : i32
    return %c0_i32, %c0_i32_0 : i32, i32
  }
  func.func @transform_5(%arg0: i32) -> (i32, i32) {
    %c0_i32 = arith.constant 0 : i32
    %c0_i32_0 = arith.constant 0 : i32
    return %arg0, %c0_i32 : i32, i32
  }
}

</mosaic_0001>

<llo_original>
// kernel: simple_fc.1
$region0: #{simple_fc.1}
  #allocation0 [shape = 'u32[]', space=smem, size = 0x4, offset = 0x4, fixed_abs, tag = 'smem constant byte address 0x4 - core index']
  #allocation1 [shape = 'u32[144,128]{1,0:T(1,128)}', space=vmem, size = 0x12000, scoped, tag = 'internal scratch']
  %s0 = inlined_call_operand.hbm [shape: f32[8,10], index: 0, kind: input, shape index: {}]
  %s1 = inlined_call_operand.hbm [shape: f32[10,10], index: 1, kind: input, shape index: {}]
  %s2 = inlined_call_operand.vmem [shape: f32[1,10], index: 2, kind: input, shape index: {}]
  %s3 = inlined_call_operand.hbm [shape: f32[10,10], index: 3, kind: input, shape index: {}]
  %s4 = inlined_call_operand.vmem [shape: f32[1,10], index: 4, kind: input, shape index: {}]
  %s5 = inlined_call_operand.hbm [shape: f32[8,10], index: 5, kind: output, shape index: {}]
  %s6 = sld [smem:[#allocation0]]
  $region42: #{simple_fc.1} parent=0
    _
  %s8 = ssub.s32 1, %s6
  %s9 = scalar_select 0, %s8, %s6
  $region1: #{simple_fc.1} parent=0
    #allocation2 [shape = 'u8[4096]{0}', space=vmem, size = 0x1000, scoped, tag = 'input window, operand 0, single buffered']
    #allocation3 [shape = 's32[1]{0}', space=sflag, size = 0x4, scoped, tag = 'scoped memory for simple_fc.1']
    #allocation4 [shape = 's32[1]{0}', space=sflag, size = 0x4, scoped, tag = 'scoped memory for simple_fc.1']
    #allocation5 [shape = 'u8[8192]{0}', space=vmem, size = 0x2000, scoped, tag = 'input window, operand 1, single buffered']
    #allocation6 [shape = 's32[1]{0}', space=sflag, size = 0x4, scoped, tag = 'scoped memory for simple_fc.1']
    #allocation7 [shape = 'u8[8192]{0}', space=vmem, size = 0x2000, scoped, tag = 'input window, operand 3, single buffered']
    #allocation8 [shape = 'u8[4096]{0}', space=vmem, size = 0x1000, scoped, tag = 'output window, operand 0, single buffered']
    %10 = vsyncpa [#allocation3], 0
    %11 = vsyncpa [#allocation6], 0
    %12 = vsyncpa [#allocation4], 0
    // Predicated region
    $region2: #{simple_fc.1} parent=1 // pred_check
      _
    $region3: #{simple_fc.1} parent=1 // pred_check_branch
      %14 = sbr.rel (0) target = $region5
    $region4: #{simple_fc.1} parent=1 // pred_region
      %s16 = ssub.s32 128, 128
      %17 = vsyncadd [#allocation3], %s16
      %s19 = sshll.u32 [#allocation2], 4
      %s20 = int_to_ptr.vmem [resolvable:$true] %s19
      %22 = dma.hbm_to_vmem [thread:$0]  %s0, 128, %s20, [#allocation3]
    $region5: #{simple_fc.1} parent=1 // pred_fallthru
      _
    // Predicated region
    $region6: #{simple_fc.1} parent=1 // pred_check
      _
    $region7: #{simple_fc.1} parent=1 // pred_check_branch
      %24 = sbr.rel (0) target = $region9
    $region8: #{simple_fc.1} parent=1 // pred_region
      %s26 = ssub.s32 256, 256
      %27 = vsyncadd [#allocation6], %s26
      %s28 = sshll.u32 [#allocation5], 4
      %s29 = int_to_ptr.vmem [resolvable:$true] %s28
      %34 = dma.hbm_to_vmem [thread:$0]  %s1, 256, %s29, [#allocation6], 128, 128, 8
    $region9: #{simple_fc.1} parent=1 // pred_fallthru
      _
    // Predicated region
    $region10: #{simple_fc.1} parent=1 // pred_check
      _
    $region11: #{simple_fc.1} parent=1 // pred_check_branch
      %36 = sbr.rel (0) target = $region13
    $region12: #{simple_fc.1} parent=1 // pred_region
      _
    $region13: #{simple_fc.1} parent=1 // pred_fallthru
      _
    // Predicated region
    $region14: #{simple_fc.1} parent=1 // pred_check
      _
    $region15: #{simple_fc.1} parent=1 // pred_check_branch
      %38 = sbr.rel (0) target = $region17
    $region16: #{simple_fc.1} parent=1 // pred_region
      %s40 = ssub.s32 256, 256
      %41 = vsyncadd [#allocation6], %s40
      %s42 = sshll.u32 [#allocation7], 4
      %s43 = int_to_ptr.vmem [resolvable:$true] %s42
      %48 = dma.hbm_to_vmem [thread:$0]  %s3, 256, %s43, [#allocation6], 128, 128, 8
    $region17: #{simple_fc.1} parent=1 // pred_fallthru
      _
    // Predicated region
    $region18: #{simple_fc.1} parent=1 // pred_check
      _
    $region19: #{simple_fc.1} parent=1 // pred_check_branch
      %50 = sbr.rel (0) target = $region21
    $region20: #{simple_fc.1} parent=1 // pred_region
      _
    $region21: #{simple_fc.1} parent=1 // pred_fallthru
      _
    // Predicated region
    $region22: #{simple_fc.1} parent=1 // pred_check
      _
    $region23: #{simple_fc.1} parent=1 // pred_check_branch
      %52 = sbr.rel (0) target = $region25
    $region24: #{simple_fc.1} parent=1 // pred_region
      %53 = dma.done [#allocation3], 128
    $region25: #{simple_fc.1} parent=1 // pred_fallthru
      _
    // Predicated region
    $region26: #{simple_fc.1} parent=1 // pred_check
      _
    $region27: #{simple_fc.1} parent=1 // pred_check_branch
      %55 = sbr.rel (0) target = $region29
    $region28: #{simple_fc.1} parent=1 // pred_region
      %56 = dma.done [#allocation6], 256
    $region29: #{simple_fc.1} parent=1 // pred_fallthru
      _
    // Predicated region
    $region30: #{simple_fc.1} parent=1 // pred_check
      _
    $region31: #{simple_fc.1} parent=1 // pred_check_branch
      %58 = sbr.rel (0) target = $region33
    $region32: #{simple_fc.1} parent=1 // pred_region
      %59 = dma.done [#allocation6], 256
    $region33: #{simple_fc.1} parent=1 // pred_fallthru
      _
    %v60 = vld [vmem:[#allocation2] sm:$0xff]
    %v61 = vld [vmem:[#allocation5] sm:$0xff]
    %v62 = vld [vmem:[#allocation5 + $0x8] sm:$0x3]
    %v63 = vld [vmem:[%s2] sm:$0x1]
    %v65 = vlaneseq
    %v66 = vshrl.u32 %v65, 7
    %v67 = vsub.s32 0, %v66
    %v68 = vrot.slane %v63, %v67
    %vm70 = vcmask 80896
    %v72 = vsel %vm70, %v60, 0
    %vm74 = vcmask 1041408
    %v76 = vsel %vm74, %v62, 0
    %78 = vmatprep.subr.mxu0 0.0
    %79 = vmatpush1.msra.mxu0 %v61
    %80 = vmatprep.subr.mxu0 0.0
    %81 = vmatpush1.msra.mxu0 %v76
    %82 = vmatprep.subr.mxu0 0.0
    %83 = vmatpush1.msra.mxu0 0.0
    %84 = vmatprep.subr.mxu0 0.0
    %85 = vmatpush1.msra.mxu0 0.0
    %86 = vmatprep.subr.mxu0 0.0
    %87 = vmatpush1.msra.mxu0 0.0
    %88 = vmatprep.subr.mxu0 0.0
    %89 = vmatpush1.msra.mxu0 0.0
    %90 = vmatprep.subr.mxu0 0.0
    %91 = vmatpush1.msra.mxu0 0.0
    %92 = vmatprep.subr.mxu0 0.0
    %93 = vmatpush1.msra.mxu0 0.0
    %94 = vmatprep.subr.mxu0 0.0
    %95 = vmatpush1.msra.mxu0 0.0
    %96 = vmatprep.subr.mxu0 0.0
    %97 = vmatpush1.msra.mxu0 0.0
    %98 = vmatprep.subr.mxu0 0.0
    %99 = vmatpush1.msra.mxu0 0.0
    %100 = vmatprep.subr.mxu0 0.0
    %101 = vmatpush1.msra.mxu0 0.0
    %102 = vmatprep.subr.mxu0 0.0
    %103 = vmatpush1.msra.mxu0 0.0
    %104 = vmatprep.subr.mxu0 0.0
    %105 = vmatpush1.msra.mxu0 0.0
    %106 = vmatprep.subr.mxu0 0.0
    %107 = vmatpush1.msra.mxu0 0.0
    %108 = vmatprep.subr.mxu0 0.0
    %109 = vmatpush1.msra.mxu0 0.0
    %110 = vmatprep.subr.mxu0 0.0
    %111 = vmatpush1.msra.mxu0 0.0
    %112 = vmatprep.subr.mxu0 0.0
    %113 = vmatpush1.msra.mxu0 0.0
    %114 = vmatprep.subr.mxu0 0.0
    %115 = vmatpush1.msra.mxu0 0.0
    %116 = vmatprep.subr.mxu0 0.0
    %117 = vmatpush1.msra.mxu0 0.0
    %118 = vmatprep.subr.mxu0 0.0
    %119 = vmatpush1.msra.mxu0 0.0
    %120 = vmatprep.subr.mxu0 0.0
    %121 = vmatpush1.msra.mxu0 0.0
    %122 = vmatprep.subr.mxu0 0.0
    %123 = vmatpush1.msra.mxu0 0.0
    %124 = vmatprep.subr.mxu0 0.0
    %125 = vmatpush1.msra.mxu0 0.0
    %126 = vmatprep.subr.mxu0 0.0
    %127 = vmatpush1.msra.mxu0 0.0
    %128 = vmatprep.subr.mxu0 0.0
    %129 = vmatpush1.msra.mxu0 0.0
    %130 = vmatprep.subr.mxu0 0.0
    %131 = vmatpush1.msra.mxu0 0.0
    %132 = vmatprep.subr.mxu0 0.0
    %133 = vmatpush1.msra.mxu0 0.0
    %134 = vmatprep.subr.mxu0 0.0
    %135 = vmatpush1.msra.mxu0 0.0
    %136 = vmatprep.subr.mxu0 0.0
    %137 = vmatpush1.msra.mxu0 0.0
    %138 = vmatprep.subr.mxu0 0.0
    %139 = vmatpush1.msra.mxu0 0.0
    %140 = vmatprep.subr.mxu0 0.0
    %141 = vmatpush1.msra.mxu0 0.0
    %142 = vmatprep.mubr.f32.mxu0 0.0
    %143 = vmatmul.mubr.f32.gmra.mrb[0].mxu0 %v72
    %v144 = vpop.f32.mrb[0].mxu0
    %v145 = vadd.f32 %v68, %v144
    %v146 = vpop.f32.mrb[0].mxu0
    %147 = vdwg.mxu0
    %v148 = vmax.f32 %v145, 0.0
    %v149 = vld [vmem:[#allocation7] sm:$0xff]
    %v150 = vld [vmem:[#allocation7 + $0x8] sm:$0x3]
    %v151 = vld [vmem:[%s4] sm:$0x1]
    %v153 = vlaneseq
    %v154 = vshrl.u32 %v153, 7
    %v155 = vsub.s32 0, %v154
    %v156 = vrot.slane %v151, %v155
    %v159 = vsel %vm70, %v148, 0
    %v162 = vsel %vm74, %v150, 0
    %164 = vmatprep.subr.mxu0 0.0
    %165 = vmatpush1.msra.mxu0 %v149
    %166 = vmatprep.subr.mxu0 0.0
    %167 = vmatpush1.msra.mxu0 %v162
    %168 = vmatprep.subr.mxu0 0.0
    %169 = vmatpush1.msra.mxu0 0.0
    %170 = vmatprep.subr.mxu0 0.0
    %171 = vmatpush1.msra.mxu0 0.0
    %172 = vmatprep.subr.mxu0 0.0
    %173 = vmatpush1.msra.mxu0 0.0
    %174 = vmatprep.subr.mxu0 0.0
    %175 = vmatpush1.msra.mxu0 0.0
    %176 = vmatprep.subr.mxu0 0.0
    %177 = vmatpush1.msra.mxu0 0.0
    %178 = vmatprep.subr.mxu0 0.0
    %179 = vmatpush1.msra.mxu0 0.0
    %180 = vmatprep.subr.mxu0 0.0
    %181 = vmatpush1.msra.mxu0 0.0
    %182 = vmatprep.subr.mxu0 0.0
    %183 = vmatpush1.msra.mxu0 0.0
    %184 = vmatprep.subr.mxu0 0.0
    %185 = vmatpush1.msra.mxu0 0.0
    %186 = vmatprep.subr.mxu0 0.0
    %187 = vmatpush1.msra.mxu0 0.0
    %188 = vmatprep.subr.mxu0 0.0
    %189 = vmatpush1.msra.mxu0 0.0
    %190 = vmatprep.subr.mxu0 0.0
    %191 = vmatpush1.msra.mxu0 0.0
    %192 = vmatprep.subr.mxu0 0.0
    %193 = vmatpush1.msra.mxu0 0.0
    %194 = vmatprep.subr.mxu0 0.0
    %195 = vmatpush1.msra.mxu0 0.0
    %196 = vmatprep.subr.mxu0 0.0
    %197 = vmatpush1.msra.mxu0 0.0
    %198 = vmatprep.subr.mxu0 0.0
    %199 = vmatpush1.msra.mxu0 0.0
    %200 = vmatprep.subr.mxu0 0.0
    %201 = vmatpush1.msra.mxu0 0.0
    %202 = vmatprep.subr.mxu0 0.0
    %203 = vmatpush1.msra.mxu0 0.0
    %204 = vmatprep.subr.mxu0 0.0
    %205 = vmatpush1.msra.mxu0 0.0
    %206 = vmatprep.subr.mxu0 0.0
    %207 = vmatpush1.msra.mxu0 0.0
    %208 = vmatprep.subr.mxu0 0.0
    %209 = vmatpush1.msra.mxu0 0.0
    %210 = vmatprep.subr.mxu0 0.0
    %211 = vmatpush1.msra.mxu0 0.0
    %212 = vmatprep.subr.mxu0 0.0
    %213 = vmatpush1.msra.mxu0 0.0
    %214 = vmatprep.subr.mxu0 0.0
    %215 = vmatpush1.msra.mxu0 0.0
    %216 = vmatprep.subr.mxu0 0.0
    %217 = vmatpush1.msra.mxu0 0.0
    %218 = vmatprep.subr.mxu0 0.0
    %219 = vmatpush1.msra.mxu0 0.0
    %220 = vmatprep.subr.mxu0 0.0
    %221 = vmatpush1.msra.mxu0 0.0
    %222 = vmatprep.subr.mxu0 0.0
    %223 = vmatpush1.msra.mxu0 0.0
    %224 = vmatprep.subr.mxu0 0.0
    %225 = vmatpush1.msra.mxu0 0.0
    %226 = vmatprep.subr.mxu0 0.0
    %227 = vmatpush1.msra.mxu0 0.0
    %228 = vmatprep.mubr.f32.mxu0 0.0
    %229 = vmatmul.mubr.f32.gmra.mrb[0].mxu0 %v159
    %v230 = vpop.f32.mrb[0].mxu0
    %v231 = vadd.f32 %v156, %v230
    %v232 = vpop.f32.mrb[0].mxu0
    %233 = vdwg.mxu0
    %234 = vst.msk [vmem:[#allocation8] sm:$0xff] %vm70, %v231
    // Predicated region
    $region34: #{simple_fc.1} parent=1 // pred_check
      _
    $region35: #{simple_fc.1} parent=1 // pred_check_branch
      %236 = sbr.rel (0) target = $region37
    $region36: #{simple_fc.1} parent=1 // pred_region
      %s238 = ssub.s32 128, 128
      %239 = vsyncadd [#allocation4], %s238
      %s241 = sshll.u32 [#allocation8], 4
      %s242 = int_to_ptr.vmem [resolvable:$true] %s241
      %244 = dma.vmem_to_hbm [thread:$0]  %s242, 128, %s5, [#allocation4]
    $region37: #{simple_fc.1} parent=1 // pred_fallthru
      _
    // Predicated region
    $region38: #{simple_fc.1} parent=1 // pred_check
      _
    $region39: #{simple_fc.1} parent=1 // pred_check_branch
      %246 = sbr.rel (0) target = $region41
    $region40: #{simple_fc.1} parent=1 // pred_region
      %247 = dma.done [#allocation4], 128
    $region41: #{simple_fc.1} parent=1 // pred_fallthru
      _
    %248 = vsyncpa [#allocation3], 1
    %249 = vsyncpa [#allocation6], 1
    %250 = vsyncpa [#allocation4], 1

</llo_original>
